<compile_context>
chip_gen: v5e
topology: v5e:2x2
jax: 0.10.0
libtpu: 0.0.40
codegen_flags: <defaults>
</compile_context>

<pallas_src>
import functools

import jax
import jax.numpy as jnp
from jax.experimental import pallas as pl
from jax.experimental.pallas import tpu as pltpu


# ---------------------------------------------------------------------------
# Fused MLP kernel.
# refs = (x_ref, w0_ref, b0_ref, ..., w{L-1}_ref, b{L-1}_ref, o_ref, h_scr)
# x_ref:  (TILE_M, D0_pad) bf16
# w_i:    (Din_pad, Dout_pad) bf16  (VMEM-resident across the batch grid)
# b_i:    (1, Dout_pad) f32
# o_ref:  (TILE_M, Dlast_pad) f32
# h_scr:  (TILE_M, max_hidden_pad) bf16 scratch for inter-layer activations
# ---------------------------------------------------------------------------
def _mlp_kernel(*refs, n_layers, activation, dims_pad):
    x_ref = refs[0]
    o_ref = refs[1 + 2 * n_layers]
    h_scr = refs[2 + 2 * n_layers]

    h = x_ref[...]  # bf16 MXU input (no redundant cast)
    for i in range(n_layers):
        w_ref = refs[1 + 2 * i]
        b_ref = refs[2 + 2 * i]
        y = jnp.dot(h, w_ref[...], preferred_element_type=jnp.float32)
        y = y + b_ref[...]  # f32 bias broadcast over batch rows
        if i < n_layers - 1:
            if activation == "sigmoid":
                y = jax.nn.sigmoid(y)
            else:  # 'relu' (and PyTorch's default fallback)
                y = jnp.maximum(y, 0.0)
            # Park the activation in explicit VMEM scratch (bf16 = next MXU input).
            d_out = dims_pad[i + 1]
            h_scr[:, :d_out] = y.astype(jnp.bfloat16)
            h = h_scr[:, :d_out]
        else:
            # Single lane-dense (multiple-of-128 wide) unmasked store.
            o_ref[...] = y.astype(o_ref.dtype)


# ---------------------------------------------------------------------------
# Helpers
# ---------------------------------------------------------------------------
def _round_up(n, m):
    return ((n + m - 1) // m) * m


def _pad_dim(d):
    # v6e/v7x MXU is 2x256x256: for "large" dims pad to 256 multiples; small dims
    # stay at the 128-lane minimum (padding tiny dims to 256 is pure waste).
    return _round_up(d, 128) if d <= 128 else _round_up(d, 256)


def _pad_to(x, shape):
    pads = [(0, t - s) for s, t in zip(x.shape, shape)]
    return jnp.pad(x, pads)


# ---------------------------------------------------------------------------
# One-time parameter preparation: pad + cast weights/biases ONCE (not per call).
# ---------------------------------------------------------------------------
def prepare_linear_model_params(params):
    """params: list of (W, b), W stored (fan_in, fan_out), b (fan_out,)."""
    in_dim = params[0][0].shape[0]
    out_dim = params[-1][0].shape[1]
    n_layers = len(params)
    dims = [in_dim] + [w.shape[1] for w, _ in params]
    dims_pad = [_pad_dim(d) for d in dims]

    flat_wb = []
    for i, (w, b) in enumerate(params):
        w_p = _pad_to(w, (dims_pad[i], dims_pad[i + 1])).astype(jnp.bfloat16)
        b_p = _pad_to(b.reshape(1, -1), (1, dims_pad[i + 1])).astype(jnp.float32)
        flat_wb += [w_p, b_p]

    return {
        "flat_wb": tuple(flat_wb),
        "dims_pad": tuple(dims_pad),
        "in_dim": in_dim,
        "out_dim": out_dim,
        "n_layers": n_layers,
    }


# ---------------------------------------------------------------------------
# Forward: batch-tiled fused pallas_call.
# ---------------------------------------------------------------------------
def linear_model_forward(prepared, x, *, activation="relu"):
    flat_wb = prepared["flat_wb"]
    dims_pad = prepared["dims_pad"]
    out_dim = prepared["out_dim"]
    n_layers = prepared["n_layers"]

    batch, in_dim = x.shape
    assert in_dim == prepared["in_dim"]

    # Batch tiling: 16-row multiples (bf16 sublane packing), 256-row tiles max.
    if batch <= 256:
        tile_m = _round_up(max(batch, 16), 16)
    else:
        tile_m = 256
    m_pad = _round_up(batch, tile_m)
    grid = (m_pad // tile_m,)

    x_p = _pad_to(x, (m_pad, dims_pad[0])).astype(jnp.bfloat16)

    # Scratch for inter-layer activations (width of the widest hidden layer).
    scr_w = max(dims_pad[1:n_layers]) if n_layers > 1 else 128

    # BlockSpecs: x/out tiled along batch; all W/b constant blocks (VMEM-resident).
    in_specs = [pl.BlockSpec((tile_m, dims_pad[0]), lambda i: (i, 0))]
    for li in range(n_layers):
        in_specs.append(
            pl.BlockSpec((dims_pad[li], dims_pad[li + 1]), lambda i: (0, 0)))
        in_specs.append(
            pl.BlockSpec((1, dims_pad[li + 1]), lambda i: (0, 0)))
    out_specs = pl.BlockSpec((tile_m, dims_pad[-1]), lambda i: (i, 0))

    # VMEM budget from the actual buffers (weights + double-buffered I/O tiles
    # + scratch), with headroom; capped at v7x's 64 MiB physical per TC.
    weight_bytes = sum(int(a.size) * a.dtype.itemsize for a in flat_wb)
    io_bytes = 2 * (tile_m * dims_pad[0] * 2 + tile_m * dims_pad[-1] * 4)
    scr_bytes = tile_m * scr_w * 2
    vmem_limit = int(1.3 * (weight_bytes + io_bytes + scr_bytes)) + (4 << 20)
    vmem_limit = min(max(vmem_limit, 8 << 20), 64 << 20)

    # Advisory cost estimate for XLA's scheduler.
    flops = 2 * sum(m_pad * dims_pad[i] * dims_pad[i + 1] for i in range(n_layers))
    transcendentals = (m_pad * sum(dims_pad[1:n_layers])
                       if (activation == "sigmoid" and n_layers > 1) else 0)
    bytes_accessed = (int(x_p.size) * 2 + weight_bytes
                      + m_pad * dims_pad[-1] * 4)

    kernel = functools.partial(_mlp_kernel, n_layers=n_layers,
                               activation=activation, dims_pad=dims_pad)

    out_p = pl.pallas_call(
        kernel,
        out_shape=jax.ShapeDtypeStruct((m_pad, dims_pad[-1]), jnp.float32),
        grid=grid,
        in_specs=in_specs,
        out_specs=out_specs,
        scratch_shapes=[pltpu.VMEM((tile_m, scr_w), jnp.bfloat16)],
        compiler_params=pltpu.CompilerParams(
            dimension_semantics=("parallel",),   # megacore sharding on v7x
            vmem_limit_bytes=vmem_limit),
        cost_estimate=pl.CostEstimate(flops=flops,
                                      transcendentals=transcendentals,
                                      bytes_accessed=bytes_accessed),
    )(x_p, *flat_wb)

    # Strip padding (padded rows/lanes contain bias+activation garbage by design).
    return out_p[:batch, :out_dim]


# ---------------------------------------------------------------------------
# Parameter construction (glue, plain JAX), PyTorch-style init.
# ---------------------------------------------------------------------------
def init_linear_model_params(key, in_dim, n_hidden, hidden_dim, out_dim,
                             dtype=jnp.float32):
    """U(-1/sqrt(fan_in), 1/sqrt(fan_in)); W stored as (fan_in, fan_out)."""
    if hidden_dim < 1:
        dims = [(in_dim, out_dim)]
    else:
        dims = [(in_dim, hidden_dim)]
        dims += [(hidden_dim, hidden_dim)] * (n_hidden - 1)
        dims += [(hidden_dim, out_dim)]
    params = []
    for fan_in, fan_out in dims:
        key, kw, kb = jax.random.split(key, 3)
        bound = 1.0 / (fan_in ** 0.5)
        w = jax.random.uniform(kw, (fan_in, fan_out), dtype, -bound, bound)
        b = jax.random.uniform(kb, (fan_out,), dtype, -bound, bound)
        params.append((w, b))
    return params


# ---------------------------------------------------------------------------
# Pure-JAX reference (same bf16-in / f32-accumulate math as the kernel).
# NOTE: an f32 PyTorch LinearModel differs slightly (bf16 MXU inputs); for
# bit-closeness to f32 a multi-pass f32 MXU path would be needed.
# ---------------------------------------------------------------------------
def reference_forward(params, x, *, activation="relu"):
    h = x
    n = len(params)
    for i, (w, b) in enumerate(params):
        h = jnp.dot(h.astype(jnp.bfloat16), w.astype(jnp.bfloat16),
                    preferred_element_type=jnp.float32) + b
        if i < n - 1:
            h = jax.nn.sigmoid(h) if activation == "sigmoid" else jnp.maximum(h, 0.0)
    return h


if __name__ == "__main__":
    # Small shapes consistent with the module: LinearModel(16, 2, 32, 8, act)
    in_dim, n_hidden, hidden_dim, out_dim = 16, 2, 32, 8
    batch = 4

    key = jax.random.PRNGKey(0)
    key_params, key_x, key_x2 = jax.random.split(key, 3)
    params = init_linear_model_params(key_params, in_dim, n_hidden,
                                      hidden_dim, out_dim)
    prepared = prepare_linear_model_params(params)   # pad/cast weights ONCE
    x = jax.random.normal(key_x, (batch, in_dim), dtype=jnp.float32)

    ok = True

    # 1) relu branch (module default).
    out = jax.block_until_ready(linear_model_forward(prepared, x,
                                                     activation="relu"))
    ref = reference_forward(params, x, activation="relu")
    ok &= out.shape == (batch, out_dim)
    ok &= bool(jnp.allclose(out, ref, atol=2e-3, rtol=2e-3))

    # 2) sigmoid branch (activation fused inside the kernel).
    out_s = jax.block_until_ready(linear_model_forward(prepared, x,
                                                       activation="sigmoid"))
    ref_s = reference_forward(params, x, activation="sigmoid")
    ok &= bool(jnp.allclose(out_s, ref_s, atol=2e-3, rtol=2e-3))

    # 3) hidden_dim < 1 branch: single Linear, no activation.
    params1 = init_linear_model_params(key_params, in_dim, n_hidden, 0, out_dim)
    prepared1 = prepare_linear_model_params(params1)
    out_1 = jax.block_until_ready(linear_model_forward(prepared1, x,
                                                       activation="relu"))
    ref_1 = reference_forward(params1, x, activation="relu")
    ok &= out_1.shape == (batch, out_dim)
    ok &= bool(jnp.allclose(out_1, ref_1, atol=2e-3, rtol=2e-3))

    # 4) grid > 1: batch tiled at 256 rows (exercises the pipelined batch grid).
    x_big = jax.random.normal(key_x2, (300, in_dim), dtype=jnp.float32)
    out_b = jax.block_until_ready(linear_model_forward(prepared, x_big,
                                                       activation="relu"))
    ref_b = reference_forward(params, x_big, activation="relu")
    ok &= out_b.shape == (300, out_dim)
    ok &= bool(jnp.allclose(out_b, ref_b, atol=2e-3, rtol=2e-3))

    assert ok, "Pallas fused MLP does not match the JAX reference"
    print("KERNEL_OK")
</pallas_src>

<mosaic_0001>
module attributes {stable_mosaic.version = 11 : i64} {
  func.func @_mlp_kernel(%arg0: i32, %arg1: memref<16x128xbf16, #tpu.memory_space<vmem>>, %arg2: memref<128x128xbf16, #tpu.memory_space<vmem>>, %arg3: memref<1x128xf32, #tpu.memory_space<vmem>>, %arg4: memref<128x128xbf16, #tpu.memory_space<vmem>>, %arg5: memref<1x128xf32, #tpu.memory_space<vmem>>, %arg6: memref<128x128xbf16, #tpu.memory_space<vmem>>, %arg7: memref<1x128xf32, #tpu.memory_space<vmem>>, %arg8: memref<16x128xf32, #tpu.memory_space<vmem>>, %arg9: memref<16x128xbf16, #tpu.memory_space<vmem>>) attributes {dimension_semantics = [#tpu.dimension_semantics<parallel>], iteration_bounds = array<i64: 1>, scalar_prefetch = 0 : i64, scratch_operands = 1 : i64, tpu.core_type = #tpu.core_type<tc>, window_params = [{transform_indices = @transform_0, window_bounds = array<i64: 16, 128>}, {pipeline_mode = #tpu.pipeline_mode<synchronous>, transform_indices = @transform_1, window_bounds = array<i64: 128, 128>}, {pipeline_mode = #tpu.pipeline_mode<synchronous>, transform_indices = @transform_2, window_bounds = array<i64: 1, 128>}, {pipeline_mode = #tpu.pipeline_mode<synchronous>, transform_indices = @transform_3, window_bounds = array<i64: 128, 128>}, {pipeline_mode = #tpu.pipeline_mode<synchronous>, transform_indices = @transform_4, window_bounds = array<i64: 1, 128>}, {pipeline_mode = #tpu.pipeline_mode<synchronous>, transform_indices = @transform_5, window_bounds = array<i64: 128, 128>}, {pipeline_mode = #tpu.pipeline_mode<synchronous>, transform_indices = @transform_6, window_bounds = array<i64: 1, 128>}, {transform_indices = @transform_7, window_bounds = array<i64: 16, 128>}]} {
    %c0 = arith.constant 0 : index
    %c0_0 = arith.constant 0 : index
    %0 = vector.load %arg1[%c0, %c0_0] : memref<16x128xbf16, #tpu.memory_space<vmem>>, vector<16x128xbf16>
    %c0_1 = arith.constant 0 : index
    %c0_2 = arith.constant 0 : index
    %1 = vector.load %arg2[%c0_1, %c0_2] : memref<128x128xbf16, #tpu.memory_space<vmem>>, vector<128x128xbf16>
    %cst = arith.constant dense<0.000000e+00> : vector<16x128xf32>
    %2 = tpu.matmul %0, %1, %cst {dimension_numbers = #tpu.dot_dimension_numbers<[1], [0], [0], [1], [0, 0, 1, 1], [], []>} : vector<16x128xbf16>, vector<128x128xbf16>, vector<16x128xf32> -> vector<16x128xf32>
    %c0_3 = arith.constant 0 : index
    %c0_4 = arith.constant 0 : index
    %3 = vector.load %arg3[%c0_3, %c0_4] : memref<1x128xf32, #tpu.memory_space<vmem>>, vector<1x128xf32>
    %4 = vector.broadcast %3 : vector<1x128xf32> to vector<16x128xf32>
    %5 = arith.addf %2, %4 : vector<16x128xf32>
    %cst_5 = arith.constant 0.000000e+00 : f32
    %6 = vector.broadcast %cst_5 : f32 to vector<16x128xf32>
    %7 = arith.maximumf %5, %6 : vector<16x128xf32>
    %8 = arith.truncf %7 : vector<16x128xf32> to vector<16x128xbf16>
    %c0_6 = arith.constant 0 : index
    %c0_7 = arith.constant 0 : index
    %9 = vector.load %arg9[%c0_6, %c0_7] : memref<16x128xbf16, #tpu.memory_space<vmem>>, vector<16x128xbf16>
    tpu.vector_store %arg9[%c0_6, %c0_7], %8 {strides = array<i32>} : memref<16x128xbf16, #tpu.memory_space<vmem>>, vector<16x128xbf16>,
    %c0_8 = arith.constant 0 : index
    %c0_9 = arith.constant 0 : index
    %10 = vector.load %arg9[%c0_8, %c0_9] : memref<16x128xbf16, #tpu.memory_space<vmem>>, vector<16x128xbf16>
    %c0_10 = arith.constant 0 : index
    %c0_11 = arith.constant 0 : index
    %11 = vector.load %arg4[%c0_10, %c0_11] : memref<128x128xbf16, #tpu.memory_space<vmem>>, vector<128x128xbf16>
    %cst_12 = arith.constant dense<0.000000e+00> : vector<16x128xf32>
    %12 = tpu.matmul %10, %11, %cst_12 {dimension_numbers = #tpu.dot_dimension_numbers<[1], [0], [0], [1], [0, 0, 1, 1], [], []>} : vector<16x128xbf16>, vector<128x128xbf16>, vector<16x128xf32> -> vector<16x128xf32>
    %c0_13 = arith.constant 0 : index
    %c0_14 = arith.constant 0 : index
    %13 = vector.load %arg5[%c0_13, %c0_14] : memref<1x128xf32, #tpu.memory_space<vmem>>, vector<1x128xf32>
    %14 = vector.broadcast %13 : vector<1x128xf32> to vector<16x128xf32>
    %15 = arith.addf %12, %14 : vector<16x128xf32>
    %cst_15 = arith.constant 0.000000e+00 : f32
    %16 = vector.broadcast %cst_15 : f32 to vector<16x128xf32>
    %17 = arith.maximumf %15, %16 : vector<16x128xf32>
    %18 = arith.truncf %17 : vector<16x128xf32> to vector<16x128xbf16>
    %c0_16 = arith.constant 0 : index
    %c0_17 = arith.constant 0 : index
    %19 = vector.load %arg9[%c0_16, %c0_17] : memref<16x128xbf16, #tpu.memory_space<vmem>>, vector<16x128xbf16>
    tpu.vector_store %arg9[%c0_16, %c0_17], %18 {strides = array<i32>} : memref<16x128xbf16, #tpu.memory_space<vmem>>, vector<16x128xbf16>,
    %c0_18 = arith.constant 0 : index
    %c0_19 = arith.constant 0 : index
    %20 = vector.load %arg9[%c0_18, %c0_19] : memref<16x128xbf16, #tpu.memory_space<vmem>>, vector<16x128xbf16>
    %c0_20 = arith.constant 0 : index
    %c0_21 = arith.constant 0 : index
    %21 = vector.load %arg6[%c0_20, %c0_21] : memref<128x128xbf16, #tpu.memory_space<vmem>>, vector<128x128xbf16>
    %cst_22 = arith.constant dense<0.000000e+00> : vector<16x128xf32>
    %22 = tpu.matmul %20, %21, %cst_22 {dimension_numbers = #tpu.dot_dimension_numbers<[1], [0], [0], [1], [0, 0, 1, 1], [], []>} : vector<16x128xbf16>, vector<128x128xbf16>, vector<16x128xf32> -> vector<16x128xf32>
    %c0_23 = arith.constant 0 : index
    %c0_24 = arith.constant 0 : index
    %23 = vector.load %arg7[%c0_23, %c0_24] : memref<1x128xf32, #tpu.memory_space<vmem>>, vector<1x128xf32>
    %24 = vector.broadcast %23 : vector<1x128xf32> to vector<16x128xf32>
    %25 = arith.addf %22, %24 : vector<16x128xf32>
    %c0_25 = arith.constant 0 : index
    %c0_26 = arith.constant 0 : index
    %26 = vector.load %arg8[%c0_25, %c0_26] : memref<16x128xf32, #tpu.memory_space<vmem>>, vector<16x128xf32>
    tpu.vector_store %arg8[%c0_25, %c0_26], %25 {strides = array<i32>} : memref<16x128xf32, #tpu.memory_space<vmem>>, vector<16x128xf32>,
    return
  }
  func.func @transform_0(%arg0: i32) -> (i32, i32) {
    %c0_i32 = arith.constant 0 : i32
    %c0_i32_0 = arith.constant 0 : i32
    return %arg0, %c0_i32 : i32, i32
  }
  func.func @transform_1(%arg0: i32) -> (i32, i32) {
    %c0_i32 = arith.constant 0 : i32
    %c0_i32_0 = arith.constant 0 : i32
    %c0_i32_1 = arith.constant 0 : i32
    return %c0_i32, %c0_i32_0 : i32, i32
  }
  func.func @transform_2(%arg0: i32) -> (i32, i32) {
    %c0_i32 = arith.constant 0 : i32
    %c0_i32_0 = arith.constant 0 : i32
    %c0_i32_1 = arith.constant 0 : i32
    return %c0_i32, %c0_i32_0 : i32, i32
  }
  func.func @transform_3(%arg0: i32) -> (i32, i32) {
    %c0_i32 = arith.constant 0 : i32
    %c0_i32_0 = arith.constant 0 : i32
    %c0_i32_1 = arith.constant 0 : i32
    return %c0_i32, %c0_i32_0 : i32, i32
  }
  func.func @transform_4(%arg0: i32) -> (i32, i32) {
    %c0_i32 = arith.constant 0 : i32
    %c0_i32_0 = arith.constant 0 : i32
    %c0_i32_1 = arith.constant 0 : i32
    return %c0_i32, %c0_i32_0 : i32, i32
  }
  func.func @transform_5(%arg0: i32) -> (i32, i32) {
    %c0_i32 = arith.constant 0 : i32
    %c0_i32_0 = arith.constant 0 : i32
    %c0_i32_1 = arith.constant 0 : i32
    return %c0_i32, %c0_i32_0 : i32, i32
  }
  func.func @transform_6(%arg0: i32) -> (i32, i32) {
    %c0_i32 = arith.constant 0 : i32
    %c0_i32_0 = arith.constant 0 : i32
    %c0_i32_1 = arith.constant 0 : i32
    return %c0_i32, %c0_i32_0 : i32, i32
  }
  func.func @transform_7(%arg0: i32) -> (i32, i32) {
    %c0_i32 = arith.constant 0 : i32
    %c0_i32_0 = arith.constant 0 : i32
    return %arg0, %c0_i32 : i32, i32
  }
}

</mosaic_0001>

<llo_original>
// kernel: tpu_custom_call.1
$region0: #{tpu_custom_call.1}
  #allocation0 [shape = 'u32[]', space=smem, size = 0x4, offset = 0x4, fixed_abs, tag = 'smem constant byte address 0x4 - core index']
  #allocation1 [shape = 'u32[72,128]{1,0:T(1,128)}', space=vmem, size = 0x9000, scoped, tag = 'internal scratch']
  #allocation2 [shape = 'bf16[16,128]{1,0:T(8,128)(2,1)}', space=vmem, size = 0x1000, scoped, tag = 'scratch operand']
  %s0 = inlined_call_operand.hbm [shape: bf16[16,128], index: 0, kind: input, shape index: {}]
  %s1 = inlined_call_operand.hbm [shape: bf16[128,128], index: 1, kind: input, shape index: {}]
  %s2 = inlined_call_operand.vmem [shape: f32[1,128], index: 2, kind: input, shape index: {}]
  %s3 = inlined_call_operand.hbm [shape: bf16[128,128], index: 3, kind: input, shape index: {}]
  %s4 = inlined_call_operand.vmem [shape: f32[1,128], index: 4, kind: input, shape index: {}]
  %s5 = inlined_call_operand.hbm [shape: bf16[128,128], index: 5, kind: input, shape index: {}]
  %s6 = inlined_call_operand.vmem [shape: f32[1,128], index: 6, kind: input, shape index: {}]
  %s7 = inlined_call_operand.hbm [shape: f32[16,128], index: 7, kind: output, shape index: {}]
  %s8 = sld [smem:[#allocation0]]
  $region54: #{tpu_custom_call.1} parent=0
    _
  %s10 = ssub.s32 1, %s8
  %s11 = scalar_select 0, %s10, %s8
  $region1: #{tpu_custom_call.1} parent=0
    #allocation3 [shape = 'u8[4096]{0}', space=vmem, size = 0x1000, scoped, tag = 'input window, operand 0, single buffered']
    #allocation4 [shape = 's32[1]{0}', space=sflag, size = 0x4, scoped, tag = 'scoped memory for tpu_custom_call.1']
    #allocation5 [shape = 's32[1]{0}', space=sflag, size = 0x4, scoped, tag = 'scoped memory for tpu_custom_call.1']
    #allocation6 [shape = 'u8[32768]{0}', space=vmem, size = 0x8000, scoped, tag = 'input window, operand 1, single buffered']
    #allocation7 [shape = 's32[1]{0}', space=sflag, size = 0x4, scoped, tag = 'scoped memory for tpu_custom_call.1']
    #allocation8 [shape = 'u8[32768]{0}', space=vmem, size = 0x8000, scoped, tag = 'input window, operand 3, single buffered']
    #allocation9 [shape = 'u8[32768]{0}', space=vmem, size = 0x8000, scoped, tag = 'input window, operand 5, single buffered']
    #allocation10 [shape = 's32[1]{0}', space=sflag, size = 0x4, scoped, tag = 'scoped memory for tpu_custom_call.1']
    #allocation11 [shape = 'u8[8192]{0}', space=vmem, size = 0x2000, scoped, tag = 'output window, operand 0, single buffered']
    %12 = vsyncpa [#allocation4], 0
    %13 = vsyncpa [#allocation7], 0
    %14 = vsyncpa [#allocation10], 0
    %15 = vsyncpa [#allocation5], 0
    // Predicated region
    $region2: #{tpu_custom_call.1} parent=1 // pred_check
      _
    $region3: #{tpu_custom_call.1} parent=1 // pred_check_branch
      %17 = sbr.rel (0) target = $region5
    $region4: #{tpu_custom_call.1} parent=1 // pred_region
      %19 = vsyncadd [#allocation4], 0
      %s20 = sshll.u32 %s0, 4
      %s21 = int_to_ptr.hbm [resolvable:$true] %s20
      %s22 = sshll.u32 [#allocation3], 4
      %s23 = int_to_ptr.vmem [resolvable:$true] %s22
      %28 = dma.hbm_to_vmem [thread:$0]  %s21, 128, %s23, [#allocation4], 64, 64, 4
    $region5: #{tpu_custom_call.1} parent=1 // pred_fallthru
      _
    // Predicated region
    $region6: #{tpu_custom_call.1} parent=1 // pred_check
      _
    $region7: #{tpu_custom_call.1} parent=1 // pred_check_branch
      %30 = sbr.rel (0) target = $region9
    $region8: #{tpu_custom_call.1} parent=1 // pred_region
      %32 = vsyncadd [#allocation7], 0
      %s33 = sshll.u32 %s1, 4
      %s34 = int_to_ptr.hbm [resolvable:$true] %s33
      %s35 = sshll.u32 [#allocation6], 4
      %s36 = int_to_ptr.vmem [resolvable:$true] %s35
      %41 = dma.hbm_to_vmem [thread:$0]  %s34, 1024, %s36, [#allocation7], 64, 64, 4
    $region9: #{tpu_custom_call.1} parent=1 // pred_fallthru
      _
    // Predicated region
    $region10: #{tpu_custom_call.1} parent=1 // pred_check
      _
    $region11: #{tpu_custom_call.1} parent=1 // pred_check_branch
      %43 = sbr.rel (0) target = $region13
    $region12: #{tpu_custom_call.1} parent=1 // pred_region
      _
    $region13: #{tpu_custom_call.1} parent=1 // pred_fallthru
      _
    // Predicated region
    $region14: #{tpu_custom_call.1} parent=1 // pred_check
      _
    $region15: #{tpu_custom_call.1} parent=1 // pred_check_branch
      %45 = sbr.rel (0) target = $region17
    $region16: #{tpu_custom_call.1} parent=1 // pred_region
      %47 = vsyncadd [#allocation7], 0
      %s48 = sshll.u32 %s3, 4
      %s49 = int_to_ptr.hbm [resolvable:$true] %s48
      %s50 = sshll.u32 [#allocation8], 4
      %s51 = int_to_ptr.vmem [resolvable:$true] %s50
      %56 = dma.hbm_to_vmem [thread:$0]  %s49, 1024, %s51, [#allocation7], 64, 64, 4
    $region17: #{tpu_custom_call.1} parent=1 // pred_fallthru
      _
    // Predicated region
    $region18: #{tpu_custom_call.1} parent=1 // pred_check
      _
    $region19: #{tpu_custom_call.1} parent=1 // pred_check_branch
      %58 = sbr.rel (0) target = $region21
    $region20: #{tpu_custom_call.1} parent=1 // pred_region
      _
    $region21: #{tpu_custom_call.1} parent=1 // pred_fallthru
      _
    // Predicated region
    $region22: #{tpu_custom_call.1} parent=1 // pred_check
      _
    $region23: #{tpu_custom_call.1} parent=1 // pred_check_branch
      %60 = sbr.rel (0) target = $region25
    $region24: #{tpu_custom_call.1} parent=1 // pred_region
      %62 = vsyncadd [#allocation10], 0
      %s63 = sshll.u32 %s5, 4
      %s64 = int_to_ptr.hbm [resolvable:$true] %s63
      %s65 = sshll.u32 [#allocation9], 4
      %s66 = int_to_ptr.vmem [resolvable:$true] %s65
      %71 = dma.hbm_to_vmem [thread:$0]  %s64, 1024, %s66, [#allocation10], 64, 64, 4
    $region25: #{tpu_custom_call.1} parent=1 // pred_fallthru
      _
    // Predicated region
    $region26: #{tpu_custom_call.1} parent=1 // pred_check
      _
    $region27: #{tpu_custom_call.1} parent=1 // pred_check_branch
      %73 = sbr.rel (0) target = $region29
    $region28: #{tpu_custom_call.1} parent=1 // pred_region
      _
    $region29: #{tpu_custom_call.1} parent=1 // pred_fallthru
      _
    // Predicated region
    $region30: #{tpu_custom_call.1} parent=1 // pred_check
      _
    $region31: #{tpu_custom_call.1} parent=1 // pred_check_branch
      %75 = sbr.rel (0) target = $region33
    $region32: #{tpu_custom_call.1} parent=1 // pred_region
      %77 = dma.done [#allocation4], 128
    $region33: #{tpu_custom_call.1} parent=1 // pred_fallthru
      _
    // Predicated region
    $region34: #{tpu_custom_call.1} parent=1 // pred_check
      _
    $region35: #{tpu_custom_call.1} parent=1 // pred_check_branch
      %79 = sbr.rel (0) target = $region37
    $region36: #{tpu_custom_call.1} parent=1 // pred_region
      %81 = dma.done [#allocation7], 1024
    $region37: #{tpu_custom_call.1} parent=1 // pred_fallthru
      _
    // Predicated region
    $region38: #{tpu_custom_call.1} parent=1 // pred_check
      _
    $region39: #{tpu_custom_call.1} parent=1 // pred_check_branch
      %83 = sbr.rel (0) target = $region41
    $region40: #{tpu_custom_call.1} parent=1 // pred_region
      %85 = dma.done [#allocation7], 1024
    $region41: #{tpu_custom_call.1} parent=1 // pred_fallthru
      _
    // Predicated region
    $region42: #{tpu_custom_call.1} parent=1 // pred_check
      _
    $region43: #{tpu_custom_call.1} parent=1 // pred_check_branch
      %87 = sbr.rel (0) target = $region45
    $region44: #{tpu_custom_call.1} parent=1 // pred_region
      %89 = dma.done [#allocation10], 1024
    $region45: #{tpu_custom_call.1} parent=1 // pred_fallthru
      _
    %v90 = vld [vmem:[#allocation3] sm:$0xf]
    %v91 = vld [vmem:[#allocation3 + $0x4] sm:$0xf]
    %v92 = vld [vmem:[#allocation6] sm:$0xf]
    %v93 = vld [vmem:[#allocation6 + $0x4] sm:$0xf]
    %v94 = vld [vmem:[#allocation6 + $0x8] sm:$0xf]
    %v95 = vld [vmem:[#allocation6 + $0xc] sm:$0xf]
    %v96 = vld [vmem:[#allocation6 + $0x10] sm:$0xf]
    %v97 = vld [vmem:[#allocation6 + $0x14] sm:$0xf]
    %v98 = vld [vmem:[#allocation6 + $0x18] sm:$0xf]
    %v99 = vld [vmem:[#allocation6 + $0x1c] sm:$0xf]
    %v100 = vld [vmem:[#allocation6 + $0x20] sm:$0xf]
    %v101 = vld [vmem:[#allocation6 + $0x24] sm:$0xf]
    %v102 = vld [vmem:[#allocation6 + $0x28] sm:$0xf]
    %v103 = vld [vmem:[#allocation6 + $0x2c] sm:$0xf]
    %v104 = vld [vmem:[#allocation6 + $0x30] sm:$0xf]
    %v105 = vld [vmem:[#allocation6 + $0x34] sm:$0xf]
    %v106 = vld [vmem:[#allocation6 + $0x38] sm:$0xf]
    %v107 = vld [vmem:[#allocation6 + $0x3c] sm:$0xf]
    %v108 = vld [vmem:[%s2] sm:$0x1]
    %v110 = vperm.slane %v108, 0
    %v114 = vunpack.c.l.b16 %v90
    %v115 = vunpack.c.l.b16 %v91
    %v116 = vpack.c.b16 %v115, %v114
    %v134 = vunpack.c.l.b16 %v92
    %v135 = vunpack.c.l.b16 %v93
    %v136 = vunpack.c.l.b16 %v94
    %v137 = vunpack.c.l.b16 %v95
    %v138 = vunpack.c.l.b16 %v96
    %v139 = vunpack.c.l.b16 %v97
    %v140 = vunpack.c.l.b16 %v98
    %v141 = vunpack.c.l.b16 %v99
    %v142 = vunpack.c.l.b16 %v100
    %v143 = vunpack.c.l.b16 %v101
    %v144 = vunpack.c.l.b16 %v102
    %v145 = vunpack.c.l.b16 %v103
    %v146 = vunpack.c.l.b16 %v104
    %v147 = vunpack.c.l.b16 %v105
    %v148 = vunpack.c.l.b16 %v106
    %v149 = vunpack.c.l.b16 %v107
    %v150 = vpack.c.b16 %v135, %v134
    %v151 = vpack.c.b16 %v137, %v136
    %v152 = vpack.c.b16 %v139, %v138
    %v153 = vpack.c.b16 %v141, %v140
    %v154 = vpack.c.b16 %v143, %v142
    %v155 = vpack.c.b16 %v145, %v144
    %v156 = vpack.c.b16 %v147, %v146
    %v157 = vpack.c.b16 %v149, %v148
    %166 = vmatpush.bf16.msra.mxu0 %v157
    %167 = vmatpush.bf16.msra.mxu0 %v156
    %168 = vmatpush.bf16.msra.mxu0 %v155
    %169 = vmatpush.bf16.msra.mxu0 %v154
    %170 = vmatpush.bf16.msra.mxu0 %v153
    %171 = vmatpush.bf16.msra.mxu0 %v152
    %172 = vmatpush.bf16.msra.mxu0 %v151
    %173 = vmatpush.bf16.msra.mxu0 %v150
    %174 = vmatmul.bf16.gmra.mxu0 %v116
    %v175 = vpop.f32.mrf.mxu0
    %v176 = vadd.f32 %v110, %v175
    %v177 = vpop.f32.mrf.mxu0
    %v178 = vadd.f32 %v110, %v177
    %179 = vdwg.mxu0
    %v180 = vmax.f32 %v176, 0.0
    %v181 = vmax.f32 %v178, 0.0
    %v182 = vpack.c.bf16 %v180, %v180
    %v183 = vpack.c.bf16 %v181, %v181
    %184 = vst [vmem:[#allocation2] sm:$0xf] %v182
    %185 = vst [vmem:[#allocation2 + $0x4] sm:$0xf] %v183
    %v186 = vld [vmem:[#allocation2] sm:$0xf]
    %v187 = vld [vmem:[#allocation2 + $0x4] sm:$0xf]
    %v188 = vld [vmem:[#allocation8] sm:$0xf]
    %v189 = vld [vmem:[#allocation8 + $0x4] sm:$0xf]
    %v190 = vld [vmem:[#allocation8 + $0x8] sm:$0xf]
    %v191 = vld [vmem:[#allocation8 + $0xc] sm:$0xf]
    %v192 = vld [vmem:[#allocation8 + $0x10] sm:$0xf]
    %v193 = vld [vmem:[#allocation8 + $0x14] sm:$0xf]
    %v194 = vld [vmem:[#allocation8 + $0x18] sm:$0xf]
    %v195 = vld [vmem:[#allocation8 + $0x1c] sm:$0xf]
    %v196 = vld [vmem:[#allocation8 + $0x20] sm:$0xf]
    %v197 = vld [vmem:[#allocation8 + $0x24] sm:$0xf]
    %v198 = vld [vmem:[#allocation8 + $0x28] sm:$0xf]
    %v199 = vld [vmem:[#allocation8 + $0x2c] sm:$0xf]
    %v200 = vld [vmem:[#allocation8 + $0x30] sm:$0xf]
    %v201 = vld [vmem:[#allocation8 + $0x34] sm:$0xf]
    %v202 = vld [vmem:[#allocation8 + $0x38] sm:$0xf]
    %v203 = vld [vmem:[#allocation8 + $0x3c] sm:$0xf]
    %v204 = vld [vmem:[%s4] sm:$0x1]
    %v206 = vperm.slane %v204, 0
    %v210 = vunpack.c.l.b16 %v186
    %v211 = vunpack.c.l.b16 %v187
    %v212 = vpack.c.b16 %v211, %v210
    %v230 = vunpack.c.l.b16 %v188
    %v231 = vunpack.c.l.b16 %v189
    %v232 = vunpack.c.l.b16 %v190
    %v233 = vunpack.c.l.b16 %v191
    %v234 = vunpack.c.l.b16 %v192
    %v235 = vunpack.c.l.b16 %v193
    %v236 = vunpack.c.l.b16 %v194
    %v237 = vunpack.c.l.b16 %v195
    %v238 = vunpack.c.l.b16 %v196
    %v239 = vunpack.c.l.b16 %v197
    %v240 = vunpack.c.l.b16 %v198
    %v241 = vunpack.c.l.b16 %v199
    %v242 = vunpack.c.l.b16 %v200
    %v243 = vunpack.c.l.b16 %v201
    %v244 = vunpack.c.l.b16 %v202
    %v245 = vunpack.c.l.b16 %v203
    %v246 = vpack.c.b16 %v231, %v230
    %v247 = vpack.c.b16 %v233, %v232
    %v248 = vpack.c.b16 %v235, %v234
    %v249 = vpack.c.b16 %v237, %v236
    %v250 = vpack.c.b16 %v239, %v238
    %v251 = vpack.c.b16 %v241, %v240
    %v252 = vpack.c.b16 %v243, %v242
    %v253 = vpack.c.b16 %v245, %v244
    %262 = vmatpush.bf16.msra.mxu0 %v253
    %263 = vmatpush.bf16.msra.mxu0 %v252
    %264 = vmatpush.bf16.msra.mxu0 %v251
    %265 = vmatpush.bf16.msra.mxu0 %v250
    %266 = vmatpush.bf16.msra.mxu0 %v249
    %267 = vmatpush.bf16.msra.mxu0 %v248
    %268 = vmatpush.bf16.msra.mxu0 %v247
    %269 = vmatpush.bf16.msra.mxu0 %v246
    %270 = vmatmul.bf16.gmra.mxu0 %v212
    %v271 = vpop.f32.mrf.mxu0
    %v272 = vadd.f32 %v206, %v271
    %v273 = vpop.f32.mrf.mxu0
    %v274 = vadd.f32 %v206, %v273
    %275 = vdwg.mxu0
    %v276 = vmax.f32 %v272, 0.0
    %v277 = vmax.f32 %v274, 0.0
    %v278 = vpack.c.bf16 %v276, %v276
    %v279 = vpack.c.bf16 %v277, %v277
    %280 = vst [vmem:[#allocation2] sm:$0xf] %v278
    %281 = vst [vmem:[#allocation2 + $0x4] sm:$0xf] %v279
    %v282 = vld [vmem:[#allocation2] sm:$0xf]
    %v283 = vld [vmem:[#allocation2 + $0x4] sm:$0xf]
    %v284 = vld [vmem:[#allocation9] sm:$0xf]
    %v285 = vld [vmem:[#allocation9 + $0x4] sm:$0xf]
    %v286 = vld [vmem:[#allocation9 + $0x8] sm:$0xf]
    %v287 = vld [vmem:[#allocation9 + $0xc] sm:$0xf]
    %v288 = vld [vmem:[#allocation9 + $0x10] sm:$0xf]
    %v289 = vld [vmem:[#allocation9 + $0x14] sm:$0xf]
    %v290 = vld [vmem:[#allocation9 + $0x18] sm:$0xf]
    %v291 = vld [vmem:[#allocation9 + $0x1c] sm:$0xf]
    %v292 = vld [vmem:[#allocation9 + $0x20] sm:$0xf]
    %v293 = vld [vmem:[#allocation9 + $0x24] sm:$0xf]
    %v294 = vld [vmem:[#allocation9 + $0x28] sm:$0xf]
    %v295 = vld [vmem:[#allocation9 + $0x2c] sm:$0xf]
    %v296 = vld [vmem:[#allocation9 + $0x30] sm:$0xf]
    %v297 = vld [vmem:[#allocation9 + $0x34] sm:$0xf]
    %v298 = vld [vmem:[#allocation9 + $0x38] sm:$0xf]
    %v299 = vld [vmem:[#allocation9 + $0x3c] sm:$0xf]
    %v300 = vld [vmem:[%s6] sm:$0x1]
    %v302 = vperm.slane %v300, 0
    %v306 = vunpack.c.l.b16 %v282
    %v307 = vunpack.c.l.b16 %v283
    %v308 = vpack.c.b16 %v307, %v306
    %v326 = vunpack.c.l.b16 %v284
    %v327 = vunpack.c.l.b16 %v285
    %v328 = vunpack.c.l.b16 %v286
    %v329 = vunpack.c.l.b16 %v287
    %v330 = vunpack.c.l.b16 %v288
    %v331 = vunpack.c.l.b16 %v289
    %v332 = vunpack.c.l.b16 %v290
    %v333 = vunpack.c.l.b16 %v291
    %v334 = vunpack.c.l.b16 %v292
    %v335 = vunpack.c.l.b16 %v293
    %v336 = vunpack.c.l.b16 %v294
    %v337 = vunpack.c.l.b16 %v295
    %v338 = vunpack.c.l.b16 %v296
    %v339 = vunpack.c.l.b16 %v297
    %v340 = vunpack.c.l.b16 %v298
    %v341 = vunpack.c.l.b16 %v299
    %v342 = vpack.c.b16 %v327, %v326
    %v343 = vpack.c.b16 %v329, %v328
    %v344 = vpack.c.b16 %v331, %v330
    %v345 = vpack.c.b16 %v333, %v332
    %v346 = vpack.c.b16 %v335, %v334
    %v347 = vpack.c.b16 %v337, %v336
    %v348 = vpack.c.b16 %v339, %v338
    %v349 = vpack.c.b16 %v341, %v340
    %358 = vmatpush.bf16.msra.mxu0 %v349
    %359 = vmatpush.bf16.msra.mxu0 %v348
    %360 = vmatpush.bf16.msra.mxu0 %v347
    %361 = vmatpush.bf16.msra.mxu0 %v346
    %362 = vmatpush.bf16.msra.mxu0 %v345
    %363 = vmatpush.bf16.msra.mxu0 %v344
    %364 = vmatpush.bf16.msra.mxu0 %v343
    %365 = vmatpush.bf16.msra.mxu0 %v342
    %366 = vmatmul.bf16.gmra.mxu0 %v308
    %v367 = vpop.f32.mrf.mxu0
    %v368 = vadd.f32 %v302, %v367
    %v369 = vpop.f32.mrf.mxu0
    %v370 = vadd.f32 %v302, %v369
    %371 = vdwg.mxu0
    %372 = vst [vmem:[#allocation11] sm:$0xff] %v368
    %373 = vst [vmem:[#allocation11 + $0x8] sm:$0xff] %v370
    // Predicated region
    $region46: #{tpu_custom_call.1} parent=1 // pred_check
      _
    $region47: #{tpu_custom_call.1} parent=1 // pred_check_branch
      %375 = sbr.rel (0) target = $region49
    $region48: #{tpu_custom_call.1} parent=1 // pred_region
      %377 = vsyncadd [#allocation5], 0
      %s378 = sshll.u32 [#allocation11], 4
      %s379 = int_to_ptr.vmem [resolvable:$true] %s378
      %s380 = sshll.u32 %s7, 4
      %s381 = int_to_ptr.hbm [resolvable:$true] %s380
      %386 = dma.vmem_to_hbm [thread:$0]  %s379, 256, %s381, [#allocation5], 128, 128, 8
    $region49: #{tpu_custom_call.1} parent=1 // pred_fallthru
      _
    // Predicated region
    $region50: #{tpu_custom_call.1} parent=1 // pred_check
      _
    $region51: #{tpu_custom_call.1} parent=1 // pred_check_branch
      %388 = sbr.rel (0) target = $region53
    $region52: #{tpu_custom_call.1} parent=1 // pred_region
      %390 = dma.done [#allocation5], 256
    $region53: #{tpu_custom_call.1} parent=1 // pred_fallthru
      _
    %391 = vsyncpa [#allocation4], 1
    %392 = vsyncpa [#allocation7], 1
    %393 = vsyncpa [#allocation10], 1
    %394 = vsyncpa [#allocation5], 1

</llo_original>
